<compile_context>
chip_gen: v7x
topology: tpu7x:2x2x1
jax: 0.10.0
libtpu: 0.0.40
codegen_flags: <defaults>
</compile_context>

<pallas_src>
import math

import jax
import jax.numpy as jnp
from jax.experimental import pallas as pl
from jax.experimental.pallas import tpu as pltpu

_LANE = 128
_SUBLANE = 8


# ----------------------------------------------------------------------------
# Parameter (buffer) construction — deterministic, mirrors tAPE.__init__
# ----------------------------------------------------------------------------
def make_tape_pe(d_model: int, max_len: int, scale_factor: float = 1.0,
                 dtype=jnp.float32) -> jnp.ndarray:
    """Builds the [1, max_len, d_model] tAPE positional-encoding buffer."""
    position = jnp.arange(0, max_len, dtype=jnp.float32)[:, None]              # [L, 1]
    div_term = jnp.exp(
        jnp.arange(0, d_model, 2, dtype=jnp.float32) * (-math.log(10000.0) / d_model)
    )                                                                            # [D/2]
    angles = position * div_term * (d_model / max_len)                           # [L, D/2]
    pe = jnp.zeros((max_len, d_model), dtype=jnp.float32)
    pe = pe.at[:, 0::2].set(jnp.sin(angles))
    pe = pe.at[:, 1::2].set(jnp.cos(angles))
    pe = scale_factor * pe[None, :, :]                                           # [1, L, D]
    return pe.astype(dtype)


# ----------------------------------------------------------------------------
# Pallas kernel: out = x + pe   (dropout == identity in eval mode)
# ----------------------------------------------------------------------------
def tape_add_kernel(x_ref, pe_ref, o_ref):
    # x_ref/o_ref: (bb, tr, tc) tile; pe_ref: (1, tr, tc) or (1, 1, tc) tile.
    # jnp broadcasting over the size-1 dims gives the per-batch pe add.
    o_ref[...] = (x_ref[...] + pe_ref[...]).astype(o_ref.dtype)


# ----------------------------------------------------------------------------
# Tiling heuristics
# ----------------------------------------------------------------------------
def _tile_budget_bytes() -> int:
    """Per x/out tile byte budget, per TPU generation."""
    kind = ""
    try:
        kind = jax.devices()[0].device_kind.lower()
    except Exception:
        pass
    if ("v5 lite" in kind) or ("v5e" in kind) or ("v5litepod" in kind):
        # ~0.82 TB/s HBM: 2 MiB tiles already hide the per-step overhead.
        return 2 << 20
    # v6e / v7x (and unknown): larger tiles amortize the ~0.35 us/step overhead
    # against 1.4-3.2 TB/s HBM; 2x(6+6)+pe fits v7x's 64 MiB physical VMEM.
    return 6 << 20


def _row_pack(itemsize: int) -> int:
    """Sublane packing multiple for the dtype (8 f32, 16 bf16, 32 int8/fp8)."""
    return max(_SUBLANE, _SUBLANE * (4 // max(1, itemsize)))


def _choose_view(B: int, L: int, D: int, pack: int):
    """Factor x into a lane-dense 3-D view [Bv, Rv, Cv].

    Primary:  [B, R, C] with R*C = L*D, C a multiple of 128 dividing L*D, and
              R >= pack when possible (pe period lives in the last two dims).
    Fallback: [1, B, L*D] when L*D has no 128-multiple factor (pe broadcast
              over the sublane dim, as in the original 2-D kernel).
    """
    LD = L * D
    if LD % _LANE == 0:
        q = LD // _LANE
        kmax = q // pack
        k = 1
        for cand in range(max(kmax, 1), 0, -1):   # largest k | q with q//k >= pack
            if q % cand == 0:
                k = cand
                break
        C = _LANE * k
        R = LD // C
        return (B, R, C), True
    return (1, B, LD), False


def _pick_block(Bv: int, Rv: int, Cv: int, itemsize: int, budget: int, pack: int):
    """Pick (bb, tr, tc) block for the [Bv, Rv, Cv] view, filling `budget` bytes."""
    # 1) sublane dim: full extent if small, else a multiple of the packing unit
    #    (no artificial cap — grow rows to fill the budget).
    if Rv <= pack:
        tr = Rv
    else:
        cap = max(pack, (budget // (_LANE * itemsize) // pack) * pack)
        tr = max(pack, min((Rv // pack) * pack, cap))
    # 2) lane dim: full extent if it fits, else a lane-dense multiple of 128.
    fit_c = budget // max(1, tr * itemsize)
    if Cv <= max(fit_c, _LANE):
        tc = Cv
    else:
        tc = max(_LANE, (min(fit_c, Cv) // _LANE) * _LANE)
    # 3) leading (batch) dim: fill whatever budget remains.
    bb = min(Bv, max(1, budget // max(1, tr * tc * itemsize)))

    # Guarantee >= 2 grid steps so v7x's two TensorCores both get work
    # (costs at most one extra ~0.35 us step on single-TC chips).
    if pl.cdiv(Bv, bb) * pl.cdiv(Rv, tr) * pl.cdiv(Cv, tc) == 1:
        if Bv >= 2:
            bb = (Bv + 1) // 2
        elif Rv >= 2 * pack:
            tr = max(pack, (((Rv + 1) // 2) // pack) * pack)
        elif Cv >= 2 * _LANE:
            tc = ((Cv // 2 + _LANE - 1) // _LANE) * _LANE
    return bb, tr, tc


# ----------------------------------------------------------------------------
# Forward wrapper
# ----------------------------------------------------------------------------
def tape_forward(x: jnp.ndarray, pe: jnp.ndarray) -> jnp.ndarray:
    """x: [B, L, D], pe: [1, max_len, D] with max_len >= L  ->  [B, L, D]."""
    B, L, D = x.shape
    assert pe.ndim == 3 and pe.shape[0] == 1 and pe.shape[2] == D, "pe must be [1, max_len, D]"
    assert pe.shape[1] >= L, "sequence length must not exceed max_len"

    # Build/keep pe in x.dtype and at length L so these are no-ops in the
    # common case (no per-call slice+cast materialization through HBM).
    if pe.shape[1] != L:
        pe = pe[:, :L, :]
    if pe.dtype != x.dtype:
        pe = pe.astype(x.dtype)

    itemsize = jnp.dtype(x.dtype).itemsize
    pack = _row_pack(itemsize)
    budget = _tile_budget_bytes()

    (Bv, Rv, Cv), folded = _choose_view(B, L, D, pack)
    if folded:
        x_v = x.reshape(Bv, Rv, Cv)          # contiguous reshape: no copy
        pe_v = pe.reshape(1, Rv, Cv)
    else:
        x_v = x.reshape(1, B, L * D)
        pe_v = pe.reshape(1, 1, L * D)

    bb, tr, tc = _pick_block(Bv, Rv, Cv, itemsize, budget, pack)
    # Innermost grid axis is the batch axis: the pe block index is constant
    # across it, so Pallas skips the redundant pe DMA for every batch tile.
    grid = (pl.cdiv(Cv, tc), pl.cdiv(Rv, tr), pl.cdiv(Bv, bb))

    x_spec = pl.BlockSpec((bb, tr, tc), lambda c, r, b: (b, r, c))
    if folded:
        pe_spec = pl.BlockSpec((1, tr, tc), lambda c, r, b: (0, r, c))
        pe_tile_bytes = tr * tc * itemsize
    else:
        pe_spec = pl.BlockSpec((1, 1, tc), lambda c, r, b: (0, 0, c))
        pe_tile_bytes = tc * itemsize

    # Explicit scoped-VMEM limit sized from the actual (double-buffered)
    # footprint: never trips the 16/32 MiB defaults, stays under v7x's 64 MiB.
    tile_bytes = bb * tr * tc * itemsize
    need = 2 * (2 * tile_bytes + pe_tile_bytes)
    vmem_limit = int(min(48 << 20, max(need + (4 << 20), 16 << 20)))

    out_v = pl.pallas_call(
        tape_add_kernel,
        out_shape=jax.ShapeDtypeStruct((Bv, Rv, Cv), x.dtype),
        grid_spec=pltpu.PrefetchScalarGridSpec(
            num_scalar_prefetch=0,
            grid=grid,
            in_specs=[x_spec, pe_spec],
            out_specs=pl.BlockSpec((bb, tr, tc), lambda c, r, b: (b, r, c)),
        ),
        compiler_params=pltpu.CompilerParams(
            dimension_semantics=("parallel", "parallel", "parallel"),
            vmem_limit_bytes=vmem_limit,
        ),
    )(x_v, pe_v)

    # TODO(synk): training-mode dropout (p=0.1, scale 1/(1-p)) should be fused
    # in-kernel via pltpu.prng_seed + pltpu.prng_random_bits to avoid a second
    # HBM pass; eval-mode forward is identity.
    return out_v.reshape(B, L, D)


# ----------------------------------------------------------------------------
# Demo / self-check
# ----------------------------------------------------------------------------
if __name__ == "__main__":
    B, L, D = 2, 16, 32          # batch, seq len (== max_len), embed dim
    key = jax.random.PRNGKey(0)
    x = jax.random.normal(key, (B, L, D), dtype=jnp.float32)

    pe = make_tape_pe(d_model=D, max_len=L, scale_factor=1.0, dtype=x.dtype)

    out = tape_forward(x, pe)
    out = jax.block_until_ready(out)

    # Reference (plain JAX) check of the forward semantics.
    ref = x + pe
    assert out.shape == (B, L, D)
    assert jnp.allclose(out, ref, atol=1e-6, rtol=1e-6)

    print("KERNEL_OK")
</pallas_src>

<mosaic_0001>
module attributes {stable_mosaic.version = 11 : i64} {
  func.func @tape_add_kernel(%arg0: i32, %arg1: i32, %arg2: i32, %arg3: memref<1x4x128xf32, #tpu.memory_space<vmem>>, %arg4: memref<1x4x128xf32, #tpu.memory_space<vmem>>, %arg5: memref<1x4x128xf32, #tpu.memory_space<vmem>>) attributes {dimension_semantics = [#tpu.dimension_semantics<parallel>, #tpu.dimension_semantics<parallel>, #tpu.dimension_semantics<parallel>], iteration_bounds = array<i64: 1, 1, 2>, scalar_prefetch = 0 : i64, scratch_operands = 0 : i64, tpu.core_type = #tpu.core_type<tc>, window_params = [{transform_indices = @transform_0, window_bounds = array<i64: 1, 4, 128>}, {transform_indices = @transform_1, window_bounds = array<i64: 1, 4, 128>}, {transform_indices = @transform_2, window_bounds = array<i64: 1, 4, 128>}]} {
    %c0 = arith.constant 0 : index
    %c0_0 = arith.constant 0 : index
    %c0_1 = arith.constant 0 : index
    %0 = vector.load %arg3[%c0, %c0_0, %c0_1] : memref<1x4x128xf32, #tpu.memory_space<vmem>>, vector<1x4x128xf32>
    %c0_2 = arith.constant 0 : index
    %c0_3 = arith.constant 0 : index
    %c0_4 = arith.constant 0 : index
    %1 = vector.load %arg4[%c0_2, %c0_3, %c0_4] : memref<1x4x128xf32, #tpu.memory_space<vmem>>, vector<1x4x128xf32>
    %2 = arith.addf %0, %1 : vector<1x4x128xf32>
    %c0_5 = arith.constant 0 : index
    %c0_6 = arith.constant 0 : index
    %c0_7 = arith.constant 0 : index
    %3 = vector.load %arg5[%c0_5, %c0_6, %c0_7] : memref<1x4x128xf32, #tpu.memory_space<vmem>>, vector<1x4x128xf32>
    tpu.vector_store %arg5[%c0_5, %c0_6, %c0_7], %2 {strides = array<i32>} : memref<1x4x128xf32, #tpu.memory_space<vmem>>, vector<1x4x128xf32>,
    return
  }
  func.func @transform_0(%arg0: i32, %arg1: i32, %arg2: i32) -> (i32, i32, i32) {
    %c0_i32 = arith.constant 0 : i32
    return %arg2, %arg1, %arg0 : i32, i32, i32
  }
  func.func @transform_1(%arg0: i32, %arg1: i32, %arg2: i32) -> (i32, i32, i32) {
    %c0_i32 = arith.constant 0 : i32
    %c0_i32_0 = arith.constant 0 : i32
    return %c0_i32, %arg1, %arg0 : i32, i32, i32
  }
  func.func @transform_2(%arg0: i32, %arg1: i32, %arg2: i32) -> (i32, i32, i32) {
    %c0_i32 = arith.constant 0 : i32
    return %arg2, %arg1, %arg0 : i32, i32, i32
  }
}

</mosaic_0001>

<llo_original>
// kernel: tpu_custom_call.1
$region0: #{tpu_custom_call.1}
  #allocation0 [shape = 'u32[]', space=smem, size = 0x4, offset = 0x4, fixed_abs, tag = 'smem constant byte address 0x4 - core index']
  #allocation1 [shape = 'u32[144,128]{1,0:T(1,128)}', space=vmem, size = 0x12000, scoped, tag = 'internal scratch']
  %s0 = inlined_call_operand.hbm [shape: f32[2,4,128], index: 0, kind: input, shape index: {}]
  %s1 = inlined_call_operand.hbm [shape: f32[1,4,128], index: 1, kind: input, shape index: {}]
  %s2 = inlined_call_operand.hbm [shape: f32[2,4,128], index: 2, kind: output, shape index: {}]
  %s3 = sld [smem:[#allocation0]]
  $region49: #{tpu_custom_call.1} parent=0
    _
  %s5 = ssub.s32 1, %s3
  %s6 = scalar_select 0, %s5, %s3
  $region1: #{tpu_custom_call.1} parent=0
    #allocation2 [shape = 'u8[4096]{0}', space=vmem, size = 0x1000, scoped, tag = 'input window, operand 0']
    #allocation3 [shape = 's32[2]{0}', space=sflag, size = 0x8, scoped, tag = 'scoped memory for tpu_custom_call.1']
    #allocation4 [shape = 's32[2]{0}', space=sflag, size = 0x8, scoped, tag = 'scoped memory for tpu_custom_call.1']
    #allocation5 [shape = 'u8[2048]{0}', space=vmem, size = 0x800, scoped, tag = 'input window, operand 1, single buffered']
    #allocation6 [shape = 's32[1]{0}', space=sflag, size = 0x4, scoped, tag = 'scoped memory for tpu_custom_call.1']
    #allocation7 [shape = 'u8[4096]{0}', space=vmem, size = 0x1000, scoped, tag = 'output window, operand 0']
    %7 = vsyncpa [#allocation3], 0
    %s8 = scalar_lea.sflag [#allocation3], 1
    %9 = vsyncpa %s8, 0
    %10 = vsyncpa [#allocation6], 0
    %11 = vsyncpa [#allocation4], 0
    %s12 = scalar_lea.sflag [#allocation4], 1
    %13 = vsyncpa %s12, 0
    loop: start=0, step=1, limit=4
    $region2: #{tpu_custom_call.1} parent=1 // loop_pre_header
      _
    $region3: #{tpu_custom_call.1} parent=1 // loop_header
      %s15 = sphi 0, %s19
      %p16 = scmp.ge.s32.totalorder %s15, 4
      %s22 = sphi 0, %s41
      %s23 = sphi 0, %s37
      %s24 = sphi 0, %s33
      %s25 = sphi 0, %s22
      %s26 = sphi 0, %s23
      %s27 = sphi 0, %s24
      %s28 = sphi 0, %s25
      %s29 = sphi 0, %s26
      %s30 = sphi 0, %s27
      %s48 = sphi 0, %s50
      %s51 = sphi 0, %s48
      %s52 = sphi 0, %s51
      %s68 = sphi 0, %s52
      %s76 = sphi 0, %s78
      %s79 = sphi 0, %s76
      %s80 = sphi 0, %s79
      %s96 = sphi 0, %s80
      %s106 = sphi 0, %s108
      %s109 = sphi 0, %s106
      %s110 = sphi 0, %s109
      %s126 = sphi 0, %s110
    $region4: #{tpu_custom_call.1} parent=1 // loop_header_branch
      %18 = sbr.rel (%p16) target = $region8
    $region5: #{tpu_custom_call.1} parent=1 // loop_body
      %s20 = ssub.s32 %s15, 1
      %s21 = ssub.s32 %s15, 2
      %s31 = sadd.s32 1, %s24
      %p32 = scmp.ge.s32.totalorder %s31, 2
      %s33 = scalar_select %p32, 0, %s31
      %s34 = sadd.s32 1, %s23
      %s35 = scalar_select %p32, %s34, %s23
      %p36 = scmp.ge.s32.totalorder %s35, 1
      %s37 = scalar_select %p36, 0, %s35
      %s38 = sadd.s32 1, %s22
      %s39 = scalar_select %p36, %s38, %s22
      %p40 = scmp.ge.s32.totalorder %s39, 1
      %s41 = scalar_select %p40, 0, %s39
      %s42 = ssub.s32 %s24, %s33
      %s43 = ssub.s32 %s23, %s37
      %s44 = sor.u32 %s42, %s43
      %s45 = ssub.s32 %s22, %s41
      %s46 = sor.u32 %s44, %s45
      %p47 = scmp.eq.s32.totalorder %s46, 0
      %s49 = sadd.s32 %s48, 1
      %s50 = scalar_select %p47, %s48, %s49
      %p53 = pneg %p47
      %p54 = scmp.eq.s32.totalorder %s15, 1
      %p55 = por %p53, %p54
      %p56 = scmp.ne.s32.totalorder %s48, %s51
      %p57 = scmp.eq.s32.totalorder %s15, 0
      %p58 = por %p56, %p57
      %p59 = scmp.ne.s32.totalorder %s48, %s51
      %p60 = scmp.eq.s32.totalorder %s20, 1
      %p61 = por %p59, %p60
      %p62 = scmp.ne.s32.totalorder %s51, %s52
      %p63 = scmp.eq.s32.totalorder %s20, 0
      %p64 = por %p62, %p63
      %p65 = scmp.ne.s32.totalorder %s51, %s52
      %p66 = scmp.eq.s32.totalorder %s21, 1
      %p67 = por %p65, %p66
      %p69 = scmp.ne.s32.totalorder %s52, %s68
      %p70 = scmp.eq.s32.totalorder %s21, 0
      %p71 = por %p69, %p70
      %s72 = ssub.s32 %s23, %s37
      %s73 = ssub.s32 %s22, %s41
      %s74 = sor.u32 %s72, %s73
      %p75 = scmp.eq.s32.totalorder %s74, 0
      %s77 = sadd.s32 %s76, 1
      %s78 = scalar_select %p75, %s76, %s77
      %p81 = pneg %p75
      %p82 = scmp.eq.s32.totalorder %s15, 1
      %p83 = por %p81, %p82
      %p84 = scmp.ne.s32.totalorder %s76, %s79
      %p85 = scmp.eq.s32.totalorder %s15, 0
      %p86 = por %p84, %p85
      %p87 = scmp.ne.s32.totalorder %s76, %s79
      %p88 = scmp.eq.s32.totalorder %s20, 1
      %p89 = por %p87, %p88
      %p90 = scmp.ne.s32.totalorder %s79, %s80
      %p91 = scmp.eq.s32.totalorder %s20, 0
      %p92 = por %p90, %p91
      %p93 = scmp.ne.s32.totalorder %s79, %s80
      %p94 = scmp.eq.s32.totalorder %s21, 1
      %p95 = por %p93, %p94
      %p97 = scmp.ne.s32.totalorder %s80, %s96
      %p98 = scmp.eq.s32.totalorder %s21, 0
      %p99 = por %p97, %p98
      %s100 = ssub.s32 %s24, %s33
      %s101 = ssub.s32 %s23, %s37
      %s102 = sor.u32 %s100, %s101
      %s103 = ssub.s32 %s22, %s41
      %s104 = sor.u32 %s102, %s103
      %p105 = scmp.eq.s32.totalorder %s104, 0
      %s107 = sadd.s32 %s106, 1
      %s108 = scalar_select %p105, %s106, %s107
      %p111 = pneg %p105
      %p112 = scmp.eq.s32.totalorder %s15, 1
      %p113 = por %p111, %p112
      %p114 = scmp.ne.s32.totalorder %s106, %s109
      %p115 = scmp.eq.s32.totalorder %s15, 0
      %p116 = por %p114, %p115
      %p117 = scmp.ne.s32.totalorder %s106, %s109
      %p118 = scmp.eq.s32.totalorder %s20, 1
      %p119 = por %p117, %p118
      %p120 = scmp.ne.s32.totalorder %s109, %s110
      %p121 = scmp.eq.s32.totalorder %s20, 0
      %p122 = por %p120, %p121
      %p123 = scmp.ne.s32.totalorder %s109, %s110
      %p124 = scmp.eq.s32.totalorder %s21, 1
      %p125 = por %p123, %p124
      %p127 = scmp.ne.s32.totalorder %s110, %s126
      %p128 = scmp.eq.s32.totalorder %s21, 0
      %p129 = por %p127, %p128
      %p130 = scmp.le.s32.totalorder 1, %s15
      %p131 = scmp.lt.s32.totalorder %s15, 3
      %p132 = pnand %p130, %p131
      %p133 = pneg %p132
      // Predicated region
      $region9: #{tpu_custom_call.1} parent=5 // pred_check
        _
      $region10: #{tpu_custom_call.1} parent=5 // pred_check_branch
        %135 = sbr.rel (%p132) target = $region12
      $region11: #{tpu_custom_call.1} parent=5 // pred_region
        %s136 = ssub.s32 %s15, 1
        // Predicated region
        $region13: #{tpu_custom_call.1} parent=11 // pred_check
          %p137 = pneg %p92
        $region14: #{tpu_custom_call.1} parent=11 // pred_check_branch
          %139 = sbr.rel (%p137) target = $region16
        $region15: #{tpu_custom_call.1} parent=11 // pred_region
          %s141 = ssub.s32 64, 64
          %142 = vsyncadd [#allocation6], %s141
          %s143 = sadd.s32 %s25, %s26
          %s144 = smul.addr %s143, 64
          %s145 = scalar_lea.hbm %s1, %s144
          %s147 = sshll.u32 [#allocation5], 4
          %s148 = int_to_ptr.vmem [resolvable:$true] %s147
          %150 = dma.hbm_to_vmem [thread:$0]  %s145, 64, %s148, [#allocation6]
        $region16: #{tpu_custom_call.1} parent=11 // pred_fallthru
          _
      $region12: #{tpu_custom_call.1} parent=5 // pred_fallthru
        _
      %p151 = scmp.lt.s32.totalorder %s15, 2
      // Predicated region
      $region17: #{tpu_custom_call.1} parent=5 // pred_check
        %p152 = pneg %p151
      $region18: #{tpu_custom_call.1} parent=5 // pred_check_branch
        %154 = sbr.rel (%p152) target = $region20
      $region19: #{tpu_custom_call.1} parent=5 // pred_region
        // Predicated region
        $region21: #{tpu_custom_call.1} parent=19 // pred_check
          %p155 = pneg %p58
        $region22: #{tpu_custom_call.1} parent=19 // pred_check_branch
          %157 = sbr.rel (%p155) target = $region24
        $region23: #{tpu_custom_call.1} parent=19 // pred_region
          %s158 = sand.u32 %s48, 1
          %s159 = scalar_lea.sflag [#allocation3], %s158
          %s160 = sand.u32 %s48, 1
          %s161 = smul.addr %s160, 4
          %s162 = scalar_lea.vmem [#allocation2], %s161
          %s164 = ssub.s32 64, 64
          %165 = vsyncadd %s159, %s164
          %s166 = sadd.s32 %s22, %s23
          %s167 = sadd.s32 %s166, %s24
          %s168 = smul.addr %s167, 64
          %s169 = scalar_lea.hbm %s0, %s168
          %s171 = sshll.u32 %s162, 4
          %s172 = int_to_ptr.vmem [resolvable:$true] %s171
          %174 = dma.hbm_to_vmem [thread:$0]  %s169, 64, %s172, %s159
        $region24: #{tpu_custom_call.1} parent=19 // pred_fallthru
          _
      $region20: #{tpu_custom_call.1} parent=5 // pred_fallthru
        _
      %p175 = scmp.le.s32.totalorder 1, %s15
      %p176 = scmp.lt.s32.totalorder %s15, 3
      %p177 = pnand %p175, %p176
      %p178 = pneg %p177
      // Predicated region
      $region25: #{tpu_custom_call.1} parent=5 // pred_check
        _
      $region26: #{tpu_custom_call.1} parent=5 // pred_check_branch
        %180 = sbr.rel (%p177) target = $region28
      $region27: #{tpu_custom_call.1} parent=5 // pred_region
        %s181 = ssub.s32 %s15, 1
        %s182 = sand.u32 %s51, 1
        %s183 = scalar_lea.sflag [#allocation3], %s182
        %s184 = sand.u32 %s51, 1
        %s185 = smul.addr %s184, 4
        %s186 = scalar_lea.vmem [#allocation2], %s185
        // Predicated region
        $region29: #{tpu_custom_call.1} parent=27 // pred_check
          %p187 = pneg %p64
        $region30: #{tpu_custom_call.1} parent=27 // pred_check_branch
          %189 = sbr.rel (%p187) target = $region32
        $region31: #{tpu_custom_call.1} parent=27 // pred_region
          %190 = dma.done %s183, 64
        $region32: #{tpu_custom_call.1} parent=27 // pred_fallthru
          _
        // Predicated region
        $region33: #{tpu_custom_call.1} parent=27 // pred_check
          %p191 = pneg %p92
        $region34: #{tpu_custom_call.1} parent=27 // pred_check_branch
          %193 = sbr.rel (%p191) target = $region36
        $region35: #{tpu_custom_call.1} parent=27 // pred_region
          %194 = dma.done [#allocation6], 64
        $region36: #{tpu_custom_call.1} parent=27 // pred_fallthru
          _
        %s195 = sand.u32 %s51, 1
        %s196 = scalar_lea.sflag [#allocation3], %s195
        %s197 = sand.u32 %s51, 1
        %s198 = smul.addr %s197, 4
        %s199 = scalar_lea.vmem [#allocation2], %s198
        %p200 = pneg %p64
        %p201 = pneg %p61
        %p202 = pneg %p92
        %p203 = pneg %p89
        %p204 = pneg %p122
        %p205 = pneg %p119
        %s206 = sand.u32 %s109, 1
        %s207 = scalar_lea.sflag [#allocation4], %s206
        %s208 = sand.u32 %s109, 1
        %s209 = smul.addr %s208, 4
        %s210 = scalar_lea.vmem [#allocation7], %s209
        %v211 = vld [vmem:[%s186] sm:$0xf]
        %v212 = vld [vmem:[#allocation5] sm:$0xf]
        %v213 = vadd.f32 %v211, %v212
        %214 = vst [vmem:[%s210] sm:$0xf] %v213
        %s215 = sand.u32 %s109, 1
        %s216 = scalar_lea.sflag [#allocation4], %s215
        %s217 = sand.u32 %s109, 1
        %s218 = smul.addr %s217, 4
        %s219 = scalar_lea.vmem [#allocation7], %s218
        // Predicated region
        $region37: #{tpu_custom_call.1} parent=27 // pred_check
          %p220 = pneg %p119
        $region38: #{tpu_custom_call.1} parent=27 // pred_check_branch
          %222 = sbr.rel (%p220) target = $region40
        $region39: #{tpu_custom_call.1} parent=27 // pred_region
          %s224 = ssub.s32 64, 64
          %225 = vsyncadd %s216, %s224
          %s226 = sadd.s32 %s25, %s26
          %s227 = sadd.s32 %s226, %s27
          %s228 = smul.addr %s227, 64
          %s229 = scalar_lea.hbm %s2, %s228
          %s231 = sshll.u32 %s219, 4
          %s232 = int_to_ptr.vmem [resolvable:$true] %s231
          %234 = dma.vmem_to_hbm [thread:$0]  %s232, 64, %s229, %s216
        $region40: #{tpu_custom_call.1} parent=27 // pred_fallthru
          _
      $region28: #{tpu_custom_call.1} parent=5 // pred_fallthru
        _
      %p235 = scmp.le.s32.totalorder 2, %s15
      // Predicated region
      $region41: #{tpu_custom_call.1} parent=5 // pred_check
        %p236 = pneg %p235
      $region42: #{tpu_custom_call.1} parent=5 // pred_check_branch
        %238 = sbr.rel (%p236) target = $region44
      $region43: #{tpu_custom_call.1} parent=5 // pred_region
        %s239 = ssub.s32 %s15, 2
        // Predicated region
        $region45: #{tpu_custom_call.1} parent=43 // pred_check
          %p240 = pneg %p125
        $region46: #{tpu_custom_call.1} parent=43 // pred_check_branch
          %242 = sbr.rel (%p240) target = $region48
        $region47: #{tpu_custom_call.1} parent=43 // pred_region
          %s243 = sand.u32 %s110, 1
          %s244 = scalar_lea.sflag [#allocation4], %s243
          %s245 = sand.u32 %s110, 1
          %s246 = smul.addr %s245, 4
          %s247 = scalar_lea.vmem [#allocation7], %s246
          %248 = dma.done %s244, 64
        $region48: #{tpu_custom_call.1} parent=43 // pred_fallthru
          _
      $region44: #{tpu_custom_call.1} parent=5 // pred_fallthru
        _
    $region6: #{tpu_custom_call.1} parent=1 // loop_footer
      %s19 = sadd.s32 1, %s15
    $region7: #{tpu_custom_call.1} parent=1 // loop_footer_branch
      %14 = sbr.rel target = $region3
    $region8: #{tpu_custom_call.1} parent=1 // loop_exit
      _
    %249 = vsyncpa [#allocation3], 1
    %s250 = scalar_lea.sflag [#allocation3], 1
    %251 = vsyncpa %s250, 1
    %252 = vsyncpa [#allocation6], 1
    %253 = vsyncpa [#allocation4], 1
    %s254 = scalar_lea.sflag [#allocation4], 1
    %255 = vsyncpa %s254, 1

</llo_original>
